<compile_context>
chip_gen: v7x
topology: tpu7x:2x2x1
jax: 0.10.0
libtpu: 0.0.40
codegen_flags: <defaults>
</compile_context>

<pallas_src>
import jax
import jax.numpy as jnp
import numpy as np
from jax.experimental import pallas as pl
from jax.experimental.pallas import tpu as pltpu


# ---------------------------------------------------------------------------
# Kernels
# ---------------------------------------------------------------------------

def gather_kernel(gmap_ref, gocc_ref, img_ref, gw_ref, vals_ref):
    """Stage 1: vals[:, j-block] = sum_g img[:, g-tile] @ Gw[g-tile, j-block].

    gmap_ref : (n_g,)      i32  SMEM  remapped HW-tile index (repeats over empty tiles)
    gocc_ref : (n_g,)      i32  SMEM  1 iff this HW tile contributes any gather weight
    img_ref  : (B, t_hw)   f32        image tile (flattened pixels on lanes)
    gw_ref   : (t_hw, t_n) bf16       weighted one-hot gather tile (weights pre-folded)
    vals_ref : (B, t_n)    f32        resident accumulator (same block across g)
    """
    g = pl.program_id(1)

    @pl.when(g == 0)
    def _():
        vals_ref[...] = jnp.zeros_like(vals_ref)

    @pl.when(gocc_ref[g] == 1)
    def _():
        vals_ref[...] += jnp.dot(img_ref[...].astype(jnp.bfloat16), gw_ref[...],
                                 preferred_element_type=jnp.float32)


def scatter_kernel(smap_ref, socc_ref, img_ref, vals_ref, s_ref, out_ref):
    """Stage 2: out = img + vals @ S  (unfilled pixels of img were pre-zeroed).

    smap_ref : (n_g,)        i32  SMEM  remapped HW-tile index for S
    socc_ref : (n_g,)        i32  SMEM  1 iff this HW tile contains unfilled pixels
    img_ref  : (B, t_hw)     f32
    vals_ref : (B, Npad)     f32        resident (same block every step)
    s_ref    : (Npad, t_hw)  bf16       one-hot scatter tile
    out_ref  : (B, t_hw)     f32
    """
    g = pl.program_id(0)

    @pl.when(socc_ref[g] == 1)
    def _():
        out_ref[...] = img_ref[...] + jnp.dot(vals_ref[...].astype(jnp.bfloat16),
                                              s_ref[...],
                                              preferred_element_type=jnp.float32)

    @pl.when(socc_ref[g] == 0)
    def _():
        out_ref[...] = img_ref[...]   # no unfilled pixels in this tile: passthrough


# ---------------------------------------------------------------------------
# Wrapper helpers
# ---------------------------------------------------------------------------

def _round_up(x, m):
    return ((x + m - 1) // m) * m


def _vmem_capacity_bytes():
    """Physical VMEM; conservative 64 MiB (v7x) fallback if the query fails."""
    try:
        info = pltpu.get_tpu_info()
        cap = getattr(info, "vmem_capacity_bytes", None)
        if cap:
            return int(cap)
    except Exception:
        pass
    return 64 * 1024 * 1024


def _pick_n_tile(npad, max_tn=4096):
    """Largest multiple of 128 that divides npad and is <= max_tn."""
    if npad <= max_tn:
        return npad
    t = (max_tn // 128) * 128
    while t >= 128:
        if npad % t == 0:
            return t
        t -= 128
    return 128


def _pick_hw_tile(hw, npad, tile_budget, max_tile_hw=None):
    """t_hw sized so the dominant double-buffered bf16 operand (<= (npad, t_hw))
    stays within `tile_budget` bytes: 2 buffers * npad * t_hw * 2 B."""
    t = (tile_budget // (2 * 2 * npad)) // 128 * 128
    t = max(128, t)
    t = min(t, 8192)                       # diminishing returns past ~1-8K lanes
    if max_tile_hw is not None:
        t = min(t, max(128, (max_tile_hw // 128) * 128))
    t = min(t, _round_up(hw, 128))
    return t


def _skip_remap(occ):
    """remap[g] = index of last non-empty tile <= g (first non-empty tile for the
    leading-empty prefix).  Consecutive equal indices => Pallas skips the re-DMA."""
    n = occ.shape[0]
    ids = jnp.arange(n, dtype=jnp.int32)
    marked = jnp.where(occ > 0, ids, -1)
    last = jax.lax.cummax(marked, axis=0)
    first = jnp.argmax(occ).astype(jnp.int32)
    return jnp.where(last < 0, first, last).astype(jnp.int32)


# ---------------------------------------------------------------------------
# Wrapper
# ---------------------------------------------------------------------------

def fill_pallas(holed_img, params, *, k=3, p=1.0, max_tile_hw=None):
    """Index/weight preprocessing (plain JAX glue) + two sparse-tile-skipping pallas_calls."""
    idx, dist, filled_idx, unfilled_idx = params
    B, H, W = holed_img.shape
    HW = H * W
    N = dist.shape[0]
    k = int(k)
    assert k <= dist.shape[1], "k must not exceed the number of distance columns"

    # ---- generation/Npad-aware tile sizes & VMEM budget -----------------------
    cap = _vmem_capacity_bytes()
    vmem_limit = min(int(cap * 0.85), 96 * 1024 * 1024)
    tile_budget = min(int(cap * 0.55), 64 * 1024 * 1024)

    npad = _round_up(max(N, 1), 128)          # lane-dense unfilled dimension
    t_n = _pick_n_tile(npad)                  # stage-1 parallel (2nd TC on v7x) axis
    t_hw = _pick_hw_tile(HW, npad, tile_budget, max_tile_hw)
    HW_pad = _round_up(HW, t_hw)              # no full-extent fallback; pad tiles are
    n_g = HW_pad // t_hw                      # all-zero in Gw/S and get skipped
    n_j = npad // t_n

    # ---- preprocessing: fold normalized weights into one gather matrix --------
    inv = 1.0 / dist.astype(jnp.float32)                     # (N, Kd)
    w = inv if p == 1.0 else inv ** p
    denom = jnp.sum(w, axis=1, keepdims=True)                # matches torch.sum(dim=1)
    wn = w[:, :k] / denom                                    # (N, k) normalized weights

    sel = filled_idx[idx[:, :k]]                             # (N, k, 2)
    gflat = (sel[..., 0].astype(jnp.int32) * W
             + sel[..., 1].astype(jnp.int32)).reshape(-1)    # (N*k,) flat gather idx
    col = jnp.broadcast_to(jnp.arange(N, dtype=jnp.int32)[:, None], (N, k)).reshape(-1)

    # Weighted gather matrix: Gw[hw, n] = sum_i wn[n, i] * [hw == gflat[n, i]]
    gw = jnp.zeros((HW_pad, npad), jnp.float32).at[gflat, col].add(wn.reshape(-1))
    gw = gw.astype(jnp.bfloat16)

    # One-hot scatter matrix (pad rows/cols all-zero).
    # NOTE: duplicate entries in unfilled_idx would be summed here, whereas the
    # reference's in-place assignment keeps a single value (edge case).
    uflat = (unfilled_idx[:, 0].astype(jnp.int32) * W
             + unfilled_idx[:, 1].astype(jnp.int32))         # (N,)
    s = jnp.zeros((npad, HW_pad), jnp.float32).at[
        jnp.arange(N, dtype=jnp.int32), uflat].set(1.0).astype(jnp.bfloat16)

    # Image: flatten, pre-zero unfilled pixels (so stage 2 is img + vals@S), pad lanes.
    img_flat = holed_img.reshape(B, HW).astype(jnp.float32).at[:, uflat].set(0.0)
    if HW_pad > HW:
        img_flat = jnp.pad(img_flat, ((0, 0), (0, HW_pad - HW)))

    # ---- per-HW-tile occupancy + DMA-skip remap tables (scalar prefetch) -------
    gocc = jnp.zeros((n_g,), jnp.int32).at[gflat // t_hw].set(1)   # gather sources
    socc = jnp.zeros((n_g,), jnp.int32).at[uflat // t_hw].set(1)   # unfilled pixels
    gmap = _skip_remap(gocc)
    smap = _skip_remap(socc)

    # ---- Stage 1: vals[b, n] = sum_hw img[b, hw] * Gw[hw, n] -------------------
    vals = pl.pallas_call(
        gather_kernel,
        out_shape=jax.ShapeDtypeStruct((B, npad), jnp.float32),
        grid_spec=pltpu.PrefetchScalarGridSpec(
            num_scalar_prefetch=2,
            grid=(n_j, n_g),                                   # (parallel Npad, reduce HW)
            in_specs=[
                pl.BlockSpec((B, t_hw), lambda j, g, gmap, gocc: (0, gmap[g])),
                pl.BlockSpec((t_hw, t_n), lambda j, g, gmap, gocc: (gmap[g], j)),
            ],
            out_specs=pl.BlockSpec((B, t_n), lambda j, g, gmap, gocc: (0, j)),
        ),
        compiler_params=pltpu.CompilerParams(
            dimension_semantics=("parallel", "arbitrary"),
            vmem_limit_bytes=vmem_limit),
    )(gmap, gocc, img_flat, gw)

    # ---- Stage 2: out = img + vals @ S  (independent HW tiles) -----------------
    out_flat = pl.pallas_call(
        scatter_kernel,
        out_shape=jax.ShapeDtypeStruct((B, HW_pad), jnp.float32),
        grid_spec=pltpu.PrefetchScalarGridSpec(
            num_scalar_prefetch=2,
            grid=(n_g,),
            in_specs=[
                pl.BlockSpec((B, t_hw), lambda g, smap, socc: (0, g)),
                pl.BlockSpec((B, npad), lambda g, smap, socc: (0, 0)),      # resident
                pl.BlockSpec((npad, t_hw), lambda g, smap, socc: (0, smap[g])),
            ],
            out_specs=pl.BlockSpec((B, t_hw), lambda g, smap, socc: (0, g)),
        ),
        compiler_params=pltpu.CompilerParams(
            dimension_semantics=("parallel",),
            vmem_limit_bytes=vmem_limit),
    )(smap, socc, img_flat, vals, s)

    return out_flat[:, :HW].reshape(B, H, W).astype(holed_img.dtype)


# ---------------------------------------------------------------------------
# Pure-JAX reference (mirror of the PyTorch forward, functional)
# ---------------------------------------------------------------------------

def fill_reference(holed_img, idx, dist, filled_idx, unfilled_idx, k, p):
    b = holed_img.shape[0]
    vals = jnp.zeros((b, dist.shape[0]), jnp.float32)
    for i in range(k):
        sel = filled_idx[idx[:, i]]                          # (N, 2)
        vals = vals + holed_img[:, sel[:, 0], sel[:, 1]] * (1.0 / dist[:, i]) ** p
    vals = vals / jnp.sum((1.0 / dist) ** p, axis=1)
    return holed_img.at[:, unfilled_idx[:, 0], unfilled_idx[:, 1]].set(vals)


if __name__ == "__main__":
    # Deterministic problem: B=2 images of 32x32, k=3 neighbours, p=1.0.
    # The hole is a contiguous band (rows 8..15), so with t_hw=128 several HW tiles
    # have no unfilled pixels (scatter skip) and two tiles have no filled pixels
    # (gather skip) -> both the skip and compute paths are exercised.
    B, H, W, K, P = 2, 32, 32, 3, 1.0
    HW = H * W

    coords = np.stack(np.meshgrid(np.arange(H), np.arange(W), indexing="ij"),
                      axis=-1).reshape(-1, 2)
    hole_mask = (coords[:, 0] >= 8) & (coords[:, 0] < 16)
    unfilled_idx = jnp.asarray(coords[hole_mask], dtype=jnp.int32)    # (256, 2)
    filled_idx = jnp.asarray(coords[~hole_mask], dtype=jnp.int32)     # (768, 2)
    N_UNFILLED = unfilled_idx.shape[0]
    N_FILLED = filled_idx.shape[0]

    key = jax.random.PRNGKey(0)
    k2, k3, k4 = jax.random.split(key, 3)
    idx = jax.random.randint(k2, (N_UNFILLED, K), 0, N_FILLED, dtype=jnp.int32)
    dist = jax.random.uniform(k3, (N_UNFILLED, K), jnp.float32, minval=0.5, maxval=4.0)

    holed_img = jax.random.normal(k4, (B, H, W), jnp.float32)
    # Zero-out the holes (cosmetic; not required by the math).
    holed_img = holed_img.at[:, unfilled_idx[:, 0], unfilled_idx[:, 1]].set(0.0)

    params = (idx, dist, filled_idx, unfilled_idx)
    ref = fill_reference(holed_img, idx, dist, filled_idx, unfilled_idx, K, P)

    # max_tile_hw=128 forces a multi-tile grid on this small demo so the sparse
    # tile-skip machinery (empty gather AND empty scatter tiles) is exercised.
    out = fill_pallas(holed_img, params, k=K, p=P, max_tile_hw=128)
    out = jax.block_until_ready(out)
    np.testing.assert_allclose(np.asarray(out), np.asarray(ref), rtol=2e-2, atol=2e-2)

    # Default (VMEM-budget-derived) tile sizes.
    out_auto = fill_pallas(holed_img, params, k=K, p=P)
    out_auto = jax.block_until_ready(out_auto)
    np.testing.assert_allclose(np.asarray(out_auto), np.asarray(ref), rtol=2e-2, atol=2e-2)

    print("KERNEL_OK")
</pallas_src>

<mosaic_0001>
module attributes {stable_mosaic.version = 11 : i64} {
  func.func @gather_kernel(%arg0: i32, %arg1: i32, %arg2: memref<8xi32, #tpu.memory_space<smem>>, %arg3: memref<8xi32, #tpu.memory_space<smem>>, %arg4: memref<2x128xf32, #tpu.memory_space<vmem>>, %arg5: memref<128x256xbf16, #tpu.memory_space<vmem>>, %arg6: memref<2x256xf32, #tpu.memory_space<vmem>>) attributes {dimension_semantics = [#tpu.dimension_semantics<parallel>, #tpu.dimension_semantics<arbitrary>], iteration_bounds = array<i64: 1, 8>, scalar_prefetch = 2 : i64, scratch_operands = 0 : i64, tpu.core_type = #tpu.core_type<tc>, window_params = [{transform_indices = @transform_0, window_bounds = array<i64: 2, 128>}, {transform_indices = @transform_1, window_bounds = array<i64: 128, 256>}, {transform_indices = @transform_2, window_bounds = array<i64: 2, 256>}]} {
    %c0_i32 = arith.constant 0 : i32
    %0 = arith.cmpi eq, %arg1, %c0_i32 : i32
    %1 = arith.extui %0 : i1 to i32
    %c0_i32_0 = arith.constant 0 : i32
    %2 = arith.cmpi ne, %1, %c0_i32_0 : i32
    scf.if %2 {
      %cst = arith.constant 0.000000e+00 : f32
      %8 = vector.broadcast %cst : f32 to vector<2x256xf32>
      %c0 = arith.constant 0 : index
      %c0_2 = arith.constant 0 : index
      %9 = vector.load %arg6[%c0, %c0_2] : memref<2x256xf32, #tpu.memory_space<vmem>>, vector<2x256xf32>
      tpu.vector_store %arg6[%c0, %c0_2], %8 {strides = array<i32>} : memref<2x256xf32, #tpu.memory_space<vmem>>, vector<2x256xf32>,
    } else {
    }
    %3 = arith.index_cast %arg1 : i32 to index
    %4 = memref.load %arg3[%3] : memref<8xi32, #tpu.memory_space<smem>>
    %c1_i32 = arith.constant 1 : i32
    %5 = arith.cmpi eq, %4, %c1_i32 : i32
    %6 = arith.extui %5 : i1 to i32
    %c0_i32_1 = arith.constant 0 : i32
    %7 = arith.cmpi ne, %6, %c0_i32_1 : i32
    scf.if %7 {
      %c0 = arith.constant 0 : index
      %c0_2 = arith.constant 0 : index
      %8 = vector.load %arg6[%c0, %c0_2] : memref<2x256xf32, #tpu.memory_space<vmem>>, vector<2x256xf32>
      %c0_3 = arith.constant 0 : index
      %c0_4 = arith.constant 0 : index
      %9 = vector.load %arg4[%c0_3, %c0_4] : memref<2x128xf32, #tpu.memory_space<vmem>>, vector<2x128xf32>
      %10 = arith.truncf %9 : vector<2x128xf32> to vector<2x128xbf16>
      %c0_5 = arith.constant 0 : index
      %c0_6 = arith.constant 0 : index
      %11 = vector.load %arg5[%c0_5, %c0_6] : memref<128x256xbf16, #tpu.memory_space<vmem>>, vector<128x256xbf16>
      %cst = arith.constant dense<0.000000e+00> : vector<2x256xf32>
      %12 = tpu.matmul %10, %11, %cst {dimension_numbers = #tpu.dot_dimension_numbers<[1], [0], [0], [1], [0, 0, 1, 1], [], []>} : vector<2x128xbf16>, vector<128x256xbf16>, vector<2x256xf32> -> vector<2x256xf32>
      %13 = arith.addf %8, %12 : vector<2x256xf32>
      %c0_7 = arith.constant 0 : index
      %c0_8 = arith.constant 0 : index
      %14 = vector.load %arg6[%c0_7, %c0_8] : memref<2x256xf32, #tpu.memory_space<vmem>>, vector<2x256xf32>
      tpu.vector_store %arg6[%c0_7, %c0_8], %13 {strides = array<i32>} : memref<2x256xf32, #tpu.memory_space<vmem>>, vector<2x256xf32>,
    } else {
    }
    return
  }
  func.func @transform_0(%arg0: i32, %arg1: i32, %arg2: memref<8xi32, #tpu.memory_space<smem>>, %arg3: memref<8xi32, #tpu.memory_space<smem>>) -> (i32, i32) {
    %0 = arith.index_cast %arg1 : i32 to index
    %1 = memref.load %arg2[%0] : memref<8xi32, #tpu.memory_space<smem>>
    %c0_i32 = arith.constant 0 : i32
    %c0_i32_0 = arith.constant 0 : i32
    return %c0_i32, %1 : i32, i32
  }
  func.func @transform_1(%arg0: i32, %arg1: i32, %arg2: memref<8xi32, #tpu.memory_space<smem>>, %arg3: memref<8xi32, #tpu.memory_space<smem>>) -> (i32, i32) {
    %0 = arith.index_cast %arg1 : i32 to index
    %1 = memref.load %arg2[%0] : memref<8xi32, #tpu.memory_space<smem>>
    %c0_i32 = arith.constant 0 : i32
    return %1, %arg0 : i32, i32
  }
  func.func @transform_2(%arg0: i32, %arg1: i32, %arg2: memref<8xi32, #tpu.memory_space<smem>>, %arg3: memref<8xi32, #tpu.memory_space<smem>>) -> (i32, i32) {
    %c0_i32 = arith.constant 0 : i32
    %c0_i32_0 = arith.constant 0 : i32
    return %c0_i32, %arg0 : i32, i32
  }
}

</mosaic_0001>

<llo_original>
// kernel: tpu_custom_call.1
$region0: #{tpu_custom_call.1}
  #allocation0 [shape = 'u32[]', space=smem, size = 0x4, offset = 0x4, fixed_abs, tag = 'smem constant byte address 0x4 - core index']
  #allocation1 [shape = 'u32[144,128]{1,0:T(1,128)}', space=vmem, size = 0x12000, scoped, tag = 'internal scratch']
  #allocation2 [shape = 's32[1]{0}', space=sflag, size = 0x4, scoped, tag = 'scoped memory for tpu_custom_call.1']
  #allocation3 [shape = 'u8[512]{0}', space=smem, size = 0x200, scoped, tag = 'prefetched SMEM operand 0']
  #allocation4 [shape = 'u8[512]{0}', space=smem, size = 0x200, scoped, tag = 'prefetched SMEM operand 1']
  %s0 = inlined_call_operand.hbm [shape: s32[8], index: 0, kind: input, shape index: {}]
  %s1 = inlined_call_operand.vmem [shape: s32[8], index: 1, kind: input, shape index: {}]
  %s2 = inlined_call_operand.hbm [shape: f32[2,1024], index: 2, kind: input, shape index: {}]
  %s3 = inlined_call_operand.hbm [shape: bf16[1024,256], index: 3, kind: input, shape index: {}]
  %s4 = inlined_call_operand.hbm [shape: f32[2,256], index: 4, kind: output, shape index: {}]
  %s5 = sld [smem:[#allocation0]]
  $region57: #{tpu_custom_call.1} parent=0
    _
  %s7 = ssub.s32 1, %s5
  %s8 = scalar_select 0, %s7, %s5
  %10 = dma.hbm_to_smem %s0, 16, [#allocation3], [#allocation2]
  %s11 = sshll.u32 %s1, 4
  %s12 = int_to_ptr.vmem [resolvable:$true] %s11
  %14 = dma.vmem_to_smem %s12, 16, [#allocation4], [#allocation2]
  %15 = dma.done [#allocation2], 32
  %16 = sfence
  $region1: #{tpu_custom_call.1} parent=0
    #allocation5 [shape = 'u8[2048]{0}', space=vmem, size = 0x800, scoped, tag = 'input window, operand 2']
    #allocation6 [shape = 's32[2]{0}', space=sflag, size = 0x8, scoped, tag = 'scoped memory for tpu_custom_call.1']
    #allocation7 [shape = 's32[2]{0}', space=sflag, size = 0x8, scoped, tag = 'scoped memory for tpu_custom_call.1']
    #allocation8 [shape = 'u8[131072]{0}', space=vmem, size = 0x20000, scoped, tag = 'input window, operand 3']
    #allocation9 [shape = 's32[2]{0}', space=sflag, size = 0x8, scoped, tag = 'scoped memory for tpu_custom_call.1']
    #allocation10 [shape = 'u8[2048]{0}', space=vmem, size = 0x800, scoped, tag = 'output window, operand 0, single buffered']
    %17 = vsyncpa [#allocation6], 0
    %s18 = scalar_lea.sflag [#allocation6], 1
    %19 = vsyncpa %s18, 0
    %20 = vsyncpa [#allocation9], 0
    %s21 = scalar_lea.sflag [#allocation9], 1
    %22 = vsyncpa %s21, 0
    %23 = vsyncpa [#allocation7], 0
    loop: start=0, step=1, limit=10
    $region2: #{tpu_custom_call.1} parent=1 // loop_pre_header
      _
    $region3: #{tpu_custom_call.1} parent=1 // loop_header
      %s25 = sphi 0, %s29
      %p26 = scmp.ge.s32.totalorder %s25, 10
      %s32 = sphi 0, %s44
      %s33 = sphi 0, %s40
      %s34 = sphi 0, %s32
      %s35 = sphi 0, %s33
      %s36 = sphi 0, %s34
      %s37 = sphi 0, %s35
      %s49 = sphi 0, %s51
      %s52 = sphi 0, %s49
      %s53 = sphi 0, %s52
      %s69 = sphi 0, %s53
      %s79 = sphi 0, %s81
      %s82 = sphi 0, %s79
      %s83 = sphi 0, %s82
      %s99 = sphi 0, %s83
      %s105 = sphi 0, %s107
      %s108 = sphi 0, %s105
      %s109 = sphi 0, %s108
      %s125 = sphi 0, %s109
    $region4: #{tpu_custom_call.1} parent=1 // loop_header_branch
      %28 = sbr.rel (%p26) target = $region8
    $region5: #{tpu_custom_call.1} parent=1 // loop_body
      %s30 = ssub.s32 %s25, 1
      %s31 = ssub.s32 %s25, 2
      %s38 = sadd.s32 1, %s33
      %p39 = scmp.ge.s32.totalorder %s38, 8
      %s40 = scalar_select %p39, 0, %s38
      %s41 = sadd.s32 1, %s32
      %s42 = scalar_select %p39, %s41, %s32
      %p43 = scmp.ge.s32.totalorder %s42, 1
      %s44 = scalar_select %p43, 0, %s42
      %s45 = sld [smem:[#allocation3 + %s33]]
      %s46 = sld [smem:[#allocation3 + %s40]]
      %s47 = ssub.s32 %s45, %s46
      %p48 = scmp.eq.s32.totalorder %s47, 0
      %s50 = sadd.s32 %s49, 1
      %s51 = scalar_select %p48, %s49, %s50
      %p54 = pneg %p48
      %p55 = scmp.eq.s32.totalorder %s25, 7
      %p56 = por %p54, %p55
      %p57 = scmp.ne.s32.totalorder %s49, %s52
      %p58 = scmp.eq.s32.totalorder %s25, 0
      %p59 = por %p57, %p58
      %p60 = scmp.ne.s32.totalorder %s49, %s52
      %p61 = scmp.eq.s32.totalorder %s30, 7
      %p62 = por %p60, %p61
      %p63 = scmp.ne.s32.totalorder %s52, %s53
      %p64 = scmp.eq.s32.totalorder %s30, 0
      %p65 = por %p63, %p64
      %p66 = scmp.ne.s32.totalorder %s52, %s53
      %p67 = scmp.eq.s32.totalorder %s31, 7
      %p68 = por %p66, %p67
      %p70 = scmp.ne.s32.totalorder %s53, %s69
      %p71 = scmp.eq.s32.totalorder %s31, 0
      %p72 = por %p70, %p71
      %s73 = sld [smem:[#allocation3 + %s33]]
      %s74 = sld [smem:[#allocation3 + %s40]]
      %s75 = ssub.s32 %s73, %s74
      %s76 = ssub.s32 %s32, %s44
      %s77 = sor.u32 %s75, %s76
      %p78 = scmp.eq.s32.totalorder %s77, 0
      %s80 = sadd.s32 %s79, 1
      %s81 = scalar_select %p78, %s79, %s80
      %p84 = pneg %p78
      %p85 = scmp.eq.s32.totalorder %s25, 7
      %p86 = por %p84, %p85
      %p87 = scmp.ne.s32.totalorder %s79, %s82
      %p88 = scmp.eq.s32.totalorder %s25, 0
      %p89 = por %p87, %p88
      %p90 = scmp.ne.s32.totalorder %s79, %s82
      %p91 = scmp.eq.s32.totalorder %s30, 7
      %p92 = por %p90, %p91
      %p93 = scmp.ne.s32.totalorder %s82, %s83
      %p94 = scmp.eq.s32.totalorder %s30, 0
      %p95 = por %p93, %p94
      %p96 = scmp.ne.s32.totalorder %s82, %s83
      %p97 = scmp.eq.s32.totalorder %s31, 7
      %p98 = por %p96, %p97
      %p100 = scmp.ne.s32.totalorder %s83, %s99
      %p101 = scmp.eq.s32.totalorder %s31, 0
      %p102 = por %p100, %p101
      %s103 = ssub.s32 %s32, %s44
      %p104 = scmp.eq.s32.totalorder %s103, 0
      %s106 = sadd.s32 %s105, 1
      %s107 = scalar_select %p104, %s105, %s106
      %p110 = pneg %p104
      %p111 = scmp.eq.s32.totalorder %s25, 7
      %p112 = por %p110, %p111
      %p113 = scmp.ne.s32.totalorder %s105, %s108
      %p114 = scmp.eq.s32.totalorder %s25, 0
      %p115 = por %p113, %p114
      %p116 = scmp.ne.s32.totalorder %s105, %s108
      %p117 = scmp.eq.s32.totalorder %s30, 7
      %p118 = por %p116, %p117
      %p119 = scmp.ne.s32.totalorder %s108, %s109
      %p120 = scmp.eq.s32.totalorder %s30, 0
      %p121 = por %p119, %p120
      %p122 = scmp.ne.s32.totalorder %s108, %s109
      %p123 = scmp.eq.s32.totalorder %s31, 7
      %p124 = por %p122, %p123
      %p126 = scmp.ne.s32.totalorder %s109, %s125
      %p127 = scmp.eq.s32.totalorder %s31, 0
      %p128 = por %p126, %p127
      %p129 = scmp.le.s32.totalorder 1, %s25
      %p130 = scmp.lt.s32.totalorder %s25, 9
      %p131 = pnand %p129, %p130
      %p132 = pneg %p131
      // Predicated region
      $region9: #{tpu_custom_call.1} parent=5 // pred_check
        _
      $region10: #{tpu_custom_call.1} parent=5 // pred_check_branch
        %134 = sbr.rel (%p131) target = $region12
      $region11: #{tpu_custom_call.1} parent=5 // pred_region
        %s135 = ssub.s32 %s25, 1
      $region12: #{tpu_custom_call.1} parent=5 // pred_fallthru
        _
      %p136 = scmp.lt.s32.totalorder %s25, 8
      // Predicated region
      $region13: #{tpu_custom_call.1} parent=5 // pred_check
        %p137 = pneg %p136
      $region14: #{tpu_custom_call.1} parent=5 // pred_check_branch
        %139 = sbr.rel (%p137) target = $region16
      $region15: #{tpu_custom_call.1} parent=5 // pred_region
        // Predicated region
        $region17: #{tpu_custom_call.1} parent=15 // pred_check
          %p140 = pneg %p59
        $region18: #{tpu_custom_call.1} parent=15 // pred_check_branch
          %142 = sbr.rel (%p140) target = $region20
        $region19: #{tpu_custom_call.1} parent=15 // pred_region
          %s143 = sand.u32 %s49, 1
          %s144 = scalar_lea.sflag [#allocation6], %s143
          %s145 = sand.u32 %s49, 1
          %s146 = smul.addr %s145, 2
          %s147 = scalar_lea.vmem [#allocation5], %s146
          %s148 = sld [smem:[#allocation3 + %s33]]
          %s150 = ssub.s32 32, 32
          %151 = vsyncadd %s144, %s150
          %s152 = smul.addr %s148, 32
          %s153 = scalar_lea.hbm %s2, %s152
          %s155 = sshll.u32 %s147, 4
          %s156 = int_to_ptr.vmem [resolvable:$true] %s155
          %158 = dma.hbm_to_vmem [thread:$0]  %s153, 32, %s156, %s144
        $region20: #{tpu_custom_call.1} parent=15 // pred_fallthru
          _
        // Predicated region
        $region21: #{tpu_custom_call.1} parent=15 // pred_check
          %p159 = pneg %p89
        $region22: #{tpu_custom_call.1} parent=15 // pred_check_branch
          %161 = sbr.rel (%p159) target = $region24
        $region23: #{tpu_custom_call.1} parent=15 // pred_region
          %s162 = sand.u32 %s79, 1
          %s163 = scalar_lea.sflag [#allocation9], %s162
          %s164 = sand.u32 %s79, 1
          %s165 = smul.addr %s164, 128
          %s166 = scalar_lea.vmem [#allocation8], %s165
          %s167 = sld [smem:[#allocation3 + %s33]]
          %s168 = smul.u32 16, %s167
          %s169 = smul.u32 2, %s32
          %s171 = ssub.s32 2048, 2048
          %172 = vsyncadd %s163, %s171
          %s173 = smul.addr %s168, 2
          %s174 = sadd.s32 %s169, %s173
          %s175 = smul.addr %s174, 64
          %s176 = scalar_lea.hbm %s3, %s175
          %s177 = sshll.u32 %s166, 4
          %s178 = int_to_ptr.vmem [resolvable:$true] %s177
          %183 = dma.hbm_to_vmem [thread:$0]  %s176, 2048, %s178, %s163, 128, 128, 8
        $region24: #{tpu_custom_call.1} parent=15 // pred_fallthru
          _
      $region16: #{tpu_custom_call.1} parent=5 // pred_fallthru
        _
      %p184 = scmp.le.s32.totalorder 1, %s25
      %p185 = scmp.lt.s32.totalorder %s25, 9
      %p186 = pnand %p184, %p185
      %p187 = pneg %p186
      // Predicated region
      $region25: #{tpu_custom_call.1} parent=5 // pred_check
        _
      $region26: #{tpu_custom_call.1} parent=5 // pred_check_branch
        %189 = sbr.rel (%p186) target = $region28
      $region27: #{tpu_custom_call.1} parent=5 // pred_region
        %s190 = ssub.s32 %s25, 1
        %s191 = sand.u32 %s52, 1
        %s192 = scalar_lea.sflag [#allocation6], %s191
        %s193 = sand.u32 %s52, 1
        %s194 = smul.addr %s193, 2
        %s195 = scalar_lea.vmem [#allocation5], %s194
        // Predicated region
        $region29: #{tpu_custom_call.1} parent=27 // pred_check
          %p196 = pneg %p65
        $region30: #{tpu_custom_call.1} parent=27 // pred_check_branch
          %198 = sbr.rel (%p196) target = $region32
        $region31: #{tpu_custom_call.1} parent=27 // pred_region
          %199 = dma.done %s192, 32
        $region32: #{tpu_custom_call.1} parent=27 // pred_fallthru
          _
        %s200 = sand.u32 %s82, 1
        %s201 = scalar_lea.sflag [#allocation9], %s200
        %s202 = sand.u32 %s82, 1
        %s203 = smul.addr %s202, 128
        %s204 = scalar_lea.vmem [#allocation8], %s203
        // Predicated region
        $region33: #{tpu_custom_call.1} parent=27 // pred_check
          %p205 = pneg %p95
        $region34: #{tpu_custom_call.1} parent=27 // pred_check_branch
          %207 = sbr.rel (%p205) target = $region36
        $region35: #{tpu_custom_call.1} parent=27 // pred_region
          %208 = dma.done %s201, 2048
        $region36: #{tpu_custom_call.1} parent=27 // pred_fallthru
          _
        %s209 = sand.u32 %s52, 1
        %s210 = scalar_lea.sflag [#allocation6], %s209
        %s211 = sand.u32 %s52, 1
        %s212 = smul.addr %s211, 2
        %s213 = scalar_lea.vmem [#allocation5], %s212
        %p214 = pneg %p65
        %p215 = pneg %p62
        %s216 = sand.u32 %s82, 1
        %s217 = scalar_lea.sflag [#allocation9], %s216
        %s218 = sand.u32 %s82, 1
        %s219 = smul.addr %s218, 128
        %s220 = scalar_lea.vmem [#allocation8], %s219
        %p221 = pneg %p95
        %p222 = pneg %p92
        %p223 = pneg %p121
        %p224 = pneg %p118
        %s225 = sld [smem:[#allocation3 + %s35]]
        %s226 = sld [smem:[#allocation3 + %s35]]
        %s227 = smul.u32 16, %s226
        %s228 = smul.u32 2, %s34
        %s229 = smul.u32 2, %s34
        %p231 = scmp.eq.s32.totalorder %s35, 0
        // Predicated region
        $region37: #{tpu_custom_call.1} parent=27 // pred_check
          %p232 = pneg %p231
        $region38: #{tpu_custom_call.1} parent=27 // pred_check_branch
          %234 = sbr.rel (%p232) target = $region40
        $region39: #{tpu_custom_call.1} parent=27 // pred_region
          %235 = vst [vmem:[#allocation10] sm:$0xf] 0.0
        $region40: #{tpu_custom_call.1} parent=27 // pred_fallthru
          _
        %s236 = sld [smem:[#allocation4 + %s35]]
        %p237 = scmp.eq.s32.totalorder %s236, 1
        // Predicated region
        $region41: #{tpu_custom_call.1} parent=27 // pred_check
          %p238 = pneg %p237
        $region42: #{tpu_custom_call.1} parent=27 // pred_check_branch
          %240 = sbr.rel (%p238) target = $region44
        $region43: #{tpu_custom_call.1} parent=27 // pred_region
          %v241 = vld [vmem:[#allocation10] sm:$0xf]
          %v242 = vld [vmem:[%s195] sm:$0x3]
          %v243 = vpack.c.bf16 %v242, %v242
          %v244 = vld [vmem:[%s204] sm:$0xff]
          %v245 = vld [vmem:[%s204 + $0x8] sm:$0xff]
          %v246 = vld [vmem:[%s204 + $0x10] sm:$0xff]
          %v247 = vld [vmem:[%s204 + $0x18] sm:$0xff]
          %v248 = vld [vmem:[%s204 + $0x20] sm:$0xff]
          %v249 = vld [vmem:[%s204 + $0x28] sm:$0xff]
          %v250 = vld [vmem:[%s204 + $0x30] sm:$0xff]
          %v251 = vld [vmem:[%s204 + $0x38] sm:$0xff]
          %v252 = vld [vmem:[%s204 + $0x40] sm:$0xff]
          %v253 = vld [vmem:[%s204 + $0x48] sm:$0xff]
          %v254 = vld [vmem:[%s204 + $0x50] sm:$0xff]
          %v255 = vld [vmem:[%s204 + $0x58] sm:$0xff]
          %v256 = vld [vmem:[%s204 + $0x60] sm:$0xff]
          %v257 = vld [vmem:[%s204 + $0x68] sm:$0xff]
          %v258 = vld [vmem:[%s204 + $0x70] sm:$0xff]
          %v259 = vld [vmem:[%s204 + $0x78] sm:$0xff]
          %v276 = vunpack.c.l.b16 %v244
          %v277 = vunpack.c.h.b16 %v244
          %v278 = vunpack.c.l.b16 %v245
          %v279 = vunpack.c.h.b16 %v245
          %v280 = vunpack.c.l.b16 %v246
          %v281 = vunpack.c.h.b16 %v246
          %v282 = vunpack.c.l.b16 %v247
          %v283 = vunpack.c.h.b16 %v247
          %v284 = vunpack.c.l.b16 %v248
          %v285 = vunpack.c.h.b16 %v248
          %v286 = vunpack.c.l.b16 %v249
          %v287 = vunpack.c.h.b16 %v249
          %v288 = vunpack.c.l.b16 %v250
          %v289 = vunpack.c.h.b16 %v250
          %v290 = vunpack.c.l.b16 %v251
          %v291 = vunpack.c.h.b16 %v251
          %v292 = vunpack.c.l.b16 %v252
          %v293 = vunpack.c.h.b16 %v252
          %v294 = vunpack.c.l.b16 %v253
          %v295 = vunpack.c.h.b16 %v253
          %v296 = vunpack.c.l.b16 %v254
          %v297 = vunpack.c.h.b16 %v254
          %v298 = vunpack.c.l.b16 %v255
          %v299 = vunpack.c.h.b16 %v255
          %v300 = vunpack.c.l.b16 %v256
          %v301 = vunpack.c.h.b16 %v256
          %v302 = vunpack.c.l.b16 %v257
          %v303 = vunpack.c.h.b16 %v257
          %v304 = vunpack.c.l.b16 %v258
          %v305 = vunpack.c.h.b16 %v258
          %v306 = vunpack.c.l.b16 %v259
          %v307 = vunpack.c.h.b16 %v259
          %v308 = vpack.c.b16 %v278, %v276
          %v309 = vpack.c.b16 %v279, %v277
          %v310 = vpack.c.b16 %v282, %v280
          %v311 = vpack.c.b16 %v283, %v281
          %v312 = vpack.c.b16 %v286, %v284
          %v313 = vpack.c.b16 %v287, %v285
          %v314 = vpack.c.b16 %v290, %v288
          %v315 = vpack.c.b16 %v291, %v289
          %v316 = vpack.c.b16 %v294, %v292
          %v317 = vpack.c.b16 %v295, %v293
          %v318 = vpack.c.b16 %v298, %v296
          %v319 = vpack.c.b16 %v299, %v297
          %v320 = vpack.c.b16 %v302, %v300
          %v321 = vpack.c.b16 %v303, %v301
          %v322 = vpack.c.b16 %v306, %v304
          %v323 = vpack.c.b16 %v307, %v305
          %340 = vmatprep.subr.bf16.mxu0 %v309
          %341 = vmatpush1.bf16.msra.mxu0 %v308
          %342 = vmatprep.subr.bf16.mxu0 %v311
          %343 = vmatpush1.bf16.msra.mxu0 %v310
          %344 = vmatprep.subr.bf16.mxu0 %v313
          %345 = vmatpush1.bf16.msra.mxu0 %v312
          %346 = vmatprep.subr.bf16.mxu0 %v315
          %347 = vmatpush1.bf16.msra.mxu0 %v314
          %348 = vmatprep.subr.bf16.mxu0 %v317
          %349 = vmatpush1.bf16.msra.mxu0 %v316
          %350 = vmatprep.subr.bf16.mxu0 %v319
          %351 = vmatpush1.bf16.msra.mxu0 %v318
          %352 = vmatprep.subr.bf16.mxu0 %v321
          %353 = vmatpush1.bf16.msra.mxu0 %v320
          %354 = vmatprep.subr.bf16.mxu0 %v323
          %355 = vmatpush1.bf16.msra.mxu0 %v322
          %356 = vmatprep.subr.bf16.mxu0 0
          %357 = vmatpush1.bf16.msra.mxu0 0
          %358 = vmatprep.subr.bf16.mxu0 0
          %359 = vmatpush1.bf16.msra.mxu0 0
          %360 = vmatprep.subr.bf16.mxu0 0
          %361 = vmatpush1.bf16.msra.mxu0 0
          %362 = vmatprep.subr.bf16.mxu0 0
          %363 = vmatpush1.bf16.msra.mxu0 0
          %364 = vmatprep.subr.bf16.mxu0 0
          %365 = vmatpush1.bf16.msra.mxu0 0
          %366 = vmatprep.subr.bf16.mxu0 0
          %367 = vmatpush1.bf16.msra.mxu0 0
          %368 = vmatprep.subr.bf16.mxu0 0
          %369 = vmatpush1.bf16.msra.mxu0 0
          %370 = vmatprep.subr.bf16.mxu0 0
          %371 = vmatpush1.bf16.msra.mxu0 0
          %372 = vmatprep.mubr.bf16.mxu0 0
          %373 = vmatmul.mubr.bf16.gmra.mrb[0].mxu0 %v243
          %v374 = vpop.f32.mrb[0].mxu0
          %v375 = vadd.f32 0.0, %v374
          %v376 = vpop.f32.mrb[0].mxu0
          %v377 = vadd.f32 0.0, %v376
          %v378 = vpop.f32.mrb[0].mxu0
          %v379 = vpop.f32.mrb[0].mxu0
          %380 = vdwg.mxu0
          %v383 = vcombine.low %v375, %v377
          %v385 = vunpack.c.l.s4 1983009808
          %v386 = vunpack.c.0.s8 %v385
          %v387 = vlaneseq
          %v388 = vshrl.u32 %v387, 7
          %v389 = vsub.s32 %v386, %v388
          %v390 = vrot.slane %v383, %v389
          %v392 = vadd.f32 %v241, %v390
          %393 = vst [vmem:[#allocation10] sm:$0xf] %v392
        $region44: #{tpu_custom_call.1} parent=27 // pred_fallthru
          _
        // Predicated region
        $region45: #{tpu_custom_call.1} parent=27 // pred_check
          %p394 = pneg %p118
        $region46: #{tpu_custom_call.1} parent=27 // pred_check_branch
          %396 = sbr.rel (%p394) target = $region48
        $region47: #{tpu_custom_call.1} parent=27 // pred_region
          %s397 = smul.u32 2, %s34
          %s399 = ssub.s32 64, 64
          %400 = vsyncadd [#allocation7], %s399
          %s401 = smul.addr %s397, 32
          %s402 = scalar_lea.hbm %s4, %s401
          %s404 = sshll.u32 [#allocation10], 4
          %s405 = int_to_ptr.vmem [resolvable:$true] %s404
          %407 = dma.vmem_to_hbm [thread:$0]  %s405, 64, %s402, [#allocation7]
        $region48: #{tpu_custom_call.1} parent=27 // pred_fallthru
          _
        // Predicated region
        $region49: #{tpu_custom_call.1} parent=27 // pred_check
          %p408 = pneg %p118
        $region50: #{tpu_custom_call.1} parent=27 // pred_check_branch
          %410 = sbr.rel (%p408) target = $region52
        $region51: #{tpu_custom_call.1} parent=27 // pred_region
          %411 = dma.done [#allocation7], 64
        $region52: #{tpu_custom_call.1} parent=27 // pred_fallthru
          _
      $region28: #{tpu_custom_call.1} parent=5 // pred_fallthru
        _
      %p412 = scmp.le.s32.totalorder 2, %s25
      // Predicated region
      $region53: #{tpu_custom_call.1} parent=5 // pred_check
        %p413 = pneg %p412
      $region54: #{tpu_custom_call.1} parent=5 // pred_check_branch
        %415 = sbr.rel (%p413) target = $region56
      $region55: #{tpu_custom_call.1} parent=5 // pred_region
        %s416 = ssub.s32 %s25, 2
      $region56: #{tpu_custom_call.1} parent=5 // pred_fallthru
        _
    $region6: #{tpu_custom_call.1} parent=1 // loop_footer
      %s29 = sadd.s32 1, %s25
    $region7: #{tpu_custom_call.1} parent=1 // loop_footer_branch
      %24 = sbr.rel target = $region3
    $region8: #{tpu_custom_call.1} parent=1 // loop_exit
      _
    %417 = vsyncpa [#allocation6], 1
    %s418 = scalar_lea.sflag [#allocation6], 1
    %419 = vsyncpa %s418, 1
    %420 = vsyncpa [#allocation9], 1
    %s421 = scalar_lea.sflag [#allocation9], 1
    %422 = vsyncpa %s421, 1
    %423 = vsyncpa [#allocation7], 1
    %s424 = scalar_lea.sflag [#allocation7], 1
    %425 = vsyncpa %s424, 1

</llo_original>
